<compile_context>
chip_gen: v5e
topology: v5e:2x2
jax: 0.10.0
libtpu: 0.0.40
codegen_flags: <defaults>
</compile_context>

<pallas_src>
import numpy as np
import jax
import jax.numpy as jnp
from jax.experimental import pallas as pl
from jax.experimental.pallas import tpu as pltpu

PROFILE_DIM = 50
HIDDEN_DIM = 256
HEAD_DIM = 128
QHEAD_DIM = 64
HEADS_IN = 3 * HEAD_DIM + QHEAD_DIM   # 448 (concat of the four head hidden widths)
HEADS_IN_PAD = 512                    # padded to a lane multiple
OUT_DIM = 4 + 3 + 3 + 2               # 12 = filter|artifact|denoise|quality
OUT_PAD = 128                         # lane-dense output width
BN_EPS = 1e-5
DEFAULT_TILE_B = 1024                 # per-tile compute >> per-grid-step overhead
COMPUTE_DTYPE = jnp.bfloat16          # MXU operand dtype (f32 accumulation)
OUT_STORE_DTYPE = jnp.bfloat16        # lane-dense output slab dtype


def _round_up(x, m):
    return ((x + m - 1) // m) * m


def _cdiv(a, b):
    return -(-a // b)


def _optimizer_kernel(
    x_ref,                               # (tb, 50) f32
    w1_ref, t1_ref,                      # encoder L1 (BN scale folded into W, bias into t)
    w2_ref, t2_ref,                      # encoder L2 (same folding)
    wh1_ref, bh1_ref,                    # fused head layer 1 (256 -> 512)
    wh2_ref, bh2_ref,                    # fused head layer 2 (512 -> 128, block-diag)
    out_ref,                             # (tb, 128) bf16, lane-dense
):
    # --- profile encoder (BN eval-mode folded into weights/shifts) ---
    x = x_ref[...].astype(COMPUTE_DTYPE)
    h = jnp.dot(x, w1_ref[...], preferred_element_type=jnp.float32)
    h = jnp.maximum(h + t1_ref[...], 0.0)           # BN + bias folded, ReLU
    # Dropout(0.2) -> identity at inference
    h = jnp.dot(h.astype(COMPUTE_DTYPE), w2_ref[...],
                preferred_element_type=jnp.float32)
    h = jnp.maximum(h + t2_ref[...], 0.0)

    # --- all four heads fused ---
    z = jnp.dot(h.astype(COMPUTE_DTYPE), wh1_ref[...],
                preferred_element_type=jnp.float32) + bh1_ref[...]
    z = jnp.maximum(z, 0.0)
    out = jnp.dot(z.astype(COMPUTE_DTYPE), wh2_ref[...],
                  preferred_element_type=jnp.float32) + bh2_ref[...]
    out_ref[...] = out.astype(out_ref.dtype)


def _init_linear(key, fan_in, fan_out):
    """Deterministic init mimicking PyTorch's default uniform(-1/sqrt(fan_in))."""
    kw, kb = jax.random.split(key)
    bound = 1.0 / np.sqrt(fan_in)
    w = jax.random.uniform(kw, (fan_in, fan_out), jnp.float32, -bound, bound)  # [in,out]
    b = jax.random.uniform(kb, (1, fan_out), jnp.float32, -bound, bound)
    return w, b


def init_params(seed=0):
    """Raw (unfused) parameters, mirroring the PyTorch module layout."""
    keys = jax.random.split(jax.random.PRNGKey(seed), 10)
    p = {}
    p["w1"], p["b1"] = _init_linear(keys[0], PROFILE_DIM, HIDDEN_DIM)
    p["w2"], p["b2"] = _init_linear(keys[1], HIDDEN_DIM, HIDDEN_DIM)
    p["wf1"], p["bf1"] = _init_linear(keys[2], HIDDEN_DIM, HEAD_DIM)
    p["wf2"], p["bf2"] = _init_linear(keys[3], HEAD_DIM, 4)
    p["wa1"], p["ba1"] = _init_linear(keys[4], HIDDEN_DIM, HEAD_DIM)
    p["wa2"], p["ba2"] = _init_linear(keys[5], HEAD_DIM, 3)
    p["wd1"], p["bd1"] = _init_linear(keys[6], HIDDEN_DIM, HEAD_DIM)
    p["wd2"], p["bd2"] = _init_linear(keys[7], HEAD_DIM, 3)
    p["wq1"], p["bq1"] = _init_linear(keys[8], HIDDEN_DIM, QHEAD_DIM)
    p["wq2"], p["bq2"] = _init_linear(keys[9], QHEAD_DIM, 2)

    # BatchNorm1d (eval): gamma=1, beta=0, running_mean=0, running_var=1
    gamma = jnp.ones((1, HIDDEN_DIM), jnp.float32)
    beta = jnp.zeros((1, HIDDEN_DIM), jnp.float32)
    rmean = jnp.zeros((1, HIDDEN_DIM), jnp.float32)
    rvar = jnp.ones((1, HIDDEN_DIM), jnp.float32)
    scale = gamma / jnp.sqrt(rvar + BN_EPS)
    shift = beta - rmean * scale
    p["s1"], p["t1"] = scale, shift
    p["s2"], p["t2"] = scale, shift
    return p


def fuse_params(p, compute_dtype=COMPUTE_DTYPE):
    """One-time host-side fusion/padding/casting of parameters for the kernel."""
    fp = {}
    # encoder layer 1: fold BN scale into W columns, bias into the BN shift
    fp["w1"] = (p["w1"] * p["s1"]).astype(compute_dtype)            # (50, 256)
    fp["t1"] = p["b1"] * p["s1"] + p["t1"]                          # (1, 256) f32
    # encoder layer 2
    fp["w2"] = (p["w2"] * p["s2"]).astype(compute_dtype)            # (256, 256)
    fp["t2"] = p["b2"] * p["s2"] + p["t2"]                          # (1, 256) f32
    # fused head first layer: [wf1 | wa1 | wd1 | wq1] -> (256, 448) -> pad (256, 512)
    wh1 = jnp.concatenate([p["wf1"], p["wa1"], p["wd1"], p["wq1"]], axis=1)
    fp["wh1"] = jnp.pad(wh1, ((0, 0), (0, HEADS_IN_PAD - HEADS_IN))).astype(compute_dtype)
    bh1 = jnp.concatenate([p["bf1"], p["ba1"], p["bd1"], p["bq1"]], axis=1)
    fp["bh1"] = jnp.pad(bh1, ((0, 0), (0, HEADS_IN_PAD - HEADS_IN)))
    # fused head second layer: block-diagonal (512, 128); zero pad rows/cols are inert
    wh2 = jnp.zeros((HEADS_IN_PAD, OUT_PAD), jnp.float32)
    wh2 = wh2.at[0:128, 0:4].set(p["wf2"])
    wh2 = wh2.at[128:256, 4:7].set(p["wa2"])
    wh2 = wh2.at[256:384, 7:10].set(p["wd2"])
    wh2 = wh2.at[384:448, 10:12].set(p["wq2"])
    fp["wh2"] = wh2.astype(compute_dtype)
    bh2 = jnp.zeros((1, OUT_PAD), jnp.float32)
    bh2 = bh2.at[:, 0:4].set(p["bf2"])
    bh2 = bh2.at[:, 4:7].set(p["ba2"])
    bh2 = bh2.at[:, 7:10].set(p["bd2"])
    bh2 = bh2.at[:, 10:12].set(p["bq2"])
    fp["bh2"] = bh2
    return fp


def _choose_tile_b(B, tile_b):
    """Tile so the grid has >=2 steps when possible (v7x megacore), clamp small B."""
    tb = min(tile_b, _round_up(_cdiv(B, 2), 8))
    return max(8, tb)


def preprocessing_optimizer_forward(profile_features, fused, tile_b=DEFAULT_TILE_B):
    """Forward pass: batch-gridded Pallas kernel; weights stay resident in VMEM."""
    B, F = profile_features.shape
    assert F == PROFILE_DIM
    x = profile_features.astype(jnp.float32)          # no HBM padding of x

    tb = _choose_tile_b(B, tile_b)
    grid = (_cdiv(B, tb),)                            # ragged last tile handled by grid

    xmap = lambda i: (i, 0)       # tile over batch
    wmap = lambda i: (0, 0)       # weights/biases resident across the grid

    flops = 2 * B * (
        PROFILE_DIM * HIDDEN_DIM
        + HIDDEN_DIM * HIDDEN_DIM
        + HIDDEN_DIM * HEADS_IN_PAD
        + HEADS_IN_PAD * OUT_PAD
    )
    weight_bytes = 2 * (
        PROFILE_DIM * HIDDEN_DIM
        + HIDDEN_DIM * HIDDEN_DIM
        + HIDDEN_DIM * HEADS_IN_PAD
        + HEADS_IN_PAD * OUT_PAD
    ) + 4 * (2 * HIDDEN_DIM + HEADS_IN_PAD + OUT_PAD)
    bytes_accessed = 4 * B * PROFILE_DIM + 2 * B * OUT_PAD + weight_bytes

    out = pl.pallas_call(
        _optimizer_kernel,
        out_shape=jax.ShapeDtypeStruct((B, OUT_PAD), OUT_STORE_DTYPE),
        grid=grid,
        in_specs=[
            pl.BlockSpec((tb, PROFILE_DIM), xmap),
            pl.BlockSpec((PROFILE_DIM, HIDDEN_DIM), wmap),
            pl.BlockSpec((1, HIDDEN_DIM), wmap),
            pl.BlockSpec((HIDDEN_DIM, HIDDEN_DIM), wmap),
            pl.BlockSpec((1, HIDDEN_DIM), wmap),
            pl.BlockSpec((HIDDEN_DIM, HEADS_IN_PAD), wmap),
            pl.BlockSpec((1, HEADS_IN_PAD), wmap),
            pl.BlockSpec((HEADS_IN_PAD, OUT_PAD), wmap),
            pl.BlockSpec((1, OUT_PAD), wmap),
        ],
        out_specs=pl.BlockSpec((tb, OUT_PAD), xmap),
        compiler_params=pltpu.CompilerParams(
            dimension_semantics=("parallel",),
            vmem_limit_bytes=32 * 1024 * 1024,
        ),
        cost_estimate=pl.CostEstimate(
            flops=flops, transcendentals=0, bytes_accessed=bytes_accessed
        ),
    )(
        x,
        fused["w1"], fused["t1"],
        fused["w2"], fused["t2"],
        fused["wh1"], fused["bh1"],
        fused["wh2"], fused["bh2"],
    )

    out = out[:, :OUT_DIM].astype(jnp.float32)
    return {
        "filter": out[:, 0:4],
        "artifact": out[:, 4:7],
        "denoise": out[:, 7:10],
        "quality": out[:, 10:12],
    }


def _reference_forward(x, p):
    """Plain-JAX f32 reference on the RAW (unfused) params for correctness checking."""
    h = x @ p["w1"] + p["b1"]
    h = jnp.maximum(h * p["s1"] + p["t1"], 0.0)
    h = h @ p["w2"] + p["b2"]
    h = jnp.maximum(h * p["s2"] + p["t2"], 0.0)

    def head(wa, ba, wb, bb):
        return jnp.maximum(h @ wa + ba, 0.0) @ wb + bb

    return {
        "filter": head(p["wf1"], p["bf1"], p["wf2"], p["bf2"]),
        "artifact": head(p["wa1"], p["ba1"], p["wa2"], p["ba2"]),
        "denoise": head(p["wd1"], p["bd1"], p["wd2"], p["bd2"]),
        "quality": head(p["wq1"], p["bq1"], p["wq2"], p["bq2"]),
    }


if __name__ == "__main__":
    key = jax.random.PRNGKey(0)
    batch = 8
    profile_features = jax.random.normal(key, (batch, PROFILE_DIM), jnp.float32)

    params = init_params(seed=0)
    fused = fuse_params(params)          # one-time host-side fusion / bf16 cast

    out = preprocessing_optimizer_forward(profile_features, fused)
    out = jax.block_until_ready(out)

    # bf16 MXU operands (f32 accumulation) + bf16 output slab => loosened tolerance.
    ref = _reference_forward(profile_features, params)
    for k in ("filter", "artifact", "denoise", "quality"):
        np.testing.assert_allclose(
            np.asarray(out[k]), np.asarray(ref[k]), rtol=2e-2, atol=2e-2
        )

    assert out["filter"].shape == (batch, 4)
    assert out["artifact"].shape == (batch, 3)
    assert out["denoise"].shape == (batch, 3)
    assert out["quality"].shape == (batch, 2)

    print("KERNEL_OK")
</pallas_src>

<mosaic_0001>
module attributes {stable_mosaic.version = 11 : i64} {
  func.func @_optimizer_kernel(%arg0: i32, %arg1: memref<8x50xf32, #tpu.memory_space<vmem>>, %arg2: memref<50x256xbf16, #tpu.memory_space<vmem>>, %arg3: memref<1x256xf32, #tpu.memory_space<vmem>>, %arg4: memref<256x256xbf16, #tpu.memory_space<vmem>>, %arg5: memref<1x256xf32, #tpu.memory_space<vmem>>, %arg6: memref<256x512xbf16, #tpu.memory_space<vmem>>, %arg7: memref<1x512xf32, #tpu.memory_space<vmem>>, %arg8: memref<512x128xbf16, #tpu.memory_space<vmem>>, %arg9: memref<1x128xf32, #tpu.memory_space<vmem>>, %arg10: memref<8x128xbf16, #tpu.memory_space<vmem>>) attributes {dimension_semantics = [#tpu.dimension_semantics<parallel>], iteration_bounds = array<i64: 1>, scalar_prefetch = 0 : i64, scratch_operands = 0 : i64, tpu.core_type = #tpu.core_type<tc>, window_params = [{transform_indices = @transform_0, window_bounds = array<i64: 8, 50>}, {pipeline_mode = #tpu.pipeline_mode<synchronous>, transform_indices = @transform_1, window_bounds = array<i64: 50, 256>}, {pipeline_mode = #tpu.pipeline_mode<synchronous>, transform_indices = @transform_2, window_bounds = array<i64: 1, 256>}, {pipeline_mode = #tpu.pipeline_mode<synchronous>, transform_indices = @transform_3, window_bounds = array<i64: 256, 256>}, {pipeline_mode = #tpu.pipeline_mode<synchronous>, transform_indices = @transform_4, window_bounds = array<i64: 1, 256>}, {pipeline_mode = #tpu.pipeline_mode<synchronous>, transform_indices = @transform_5, window_bounds = array<i64: 256, 512>}, {pipeline_mode = #tpu.pipeline_mode<synchronous>, transform_indices = @transform_6, window_bounds = array<i64: 1, 512>}, {pipeline_mode = #tpu.pipeline_mode<synchronous>, transform_indices = @transform_7, window_bounds = array<i64: 512, 128>}, {pipeline_mode = #tpu.pipeline_mode<synchronous>, transform_indices = @transform_8, window_bounds = array<i64: 1, 128>}, {transform_indices = @transform_9, window_bounds = array<i64: 8, 128>}]} {
    %c0 = arith.constant 0 : index
    %c0_0 = arith.constant 0 : index
    %0 = vector.load %arg1[%c0, %c0_0] : memref<8x50xf32, #tpu.memory_space<vmem>>, vector<8x50xf32>
    %1 = arith.truncf %0 : vector<8x50xf32> to vector<8x50xbf16>
    %c0_1 = arith.constant 0 : index
    %c0_2 = arith.constant 0 : index
    %2 = vector.load %arg2[%c0_1, %c0_2] : memref<50x256xbf16, #tpu.memory_space<vmem>>, vector<50x256xbf16>
    %cst = arith.constant dense<0.000000e+00> : vector<8x256xf32>
    %3 = tpu.matmul %1, %2, %cst {dimension_numbers = #tpu.dot_dimension_numbers<[1], [0], [0], [1], [0, 0, 1, 1], [], []>} : vector<8x50xbf16>, vector<50x256xbf16>, vector<8x256xf32> -> vector<8x256xf32>
    %c0_3 = arith.constant 0 : index
    %c0_4 = arith.constant 0 : index
    %4 = vector.load %arg3[%c0_3, %c0_4] : memref<1x256xf32, #tpu.memory_space<vmem>>, vector<1x256xf32>
    %5 = vector.broadcast %4 : vector<1x256xf32> to vector<8x256xf32>
    %6 = arith.addf %3, %5 : vector<8x256xf32>
    %cst_5 = arith.constant 0.000000e+00 : f32
    %7 = vector.broadcast %cst_5 : f32 to vector<8x256xf32>
    %8 = arith.maximumf %6, %7 : vector<8x256xf32>
    %9 = arith.truncf %8 : vector<8x256xf32> to vector<8x256xbf16>
    %c0_6 = arith.constant 0 : index
    %c0_7 = arith.constant 0 : index
    %10 = vector.load %arg4[%c0_6, %c0_7] : memref<256x256xbf16, #tpu.memory_space<vmem>>, vector<256x256xbf16>
    %cst_8 = arith.constant dense<0.000000e+00> : vector<8x256xf32>
    %11 = tpu.matmul %9, %10, %cst_8 {dimension_numbers = #tpu.dot_dimension_numbers<[1], [0], [0], [1], [0, 0, 1, 1], [], []>} : vector<8x256xbf16>, vector<256x256xbf16>, vector<8x256xf32> -> vector<8x256xf32>
    %c0_9 = arith.constant 0 : index
    %c0_10 = arith.constant 0 : index
    %12 = vector.load %arg5[%c0_9, %c0_10] : memref<1x256xf32, #tpu.memory_space<vmem>>, vector<1x256xf32>
    %13 = vector.broadcast %12 : vector<1x256xf32> to vector<8x256xf32>
    %14 = arith.addf %11, %13 : vector<8x256xf32>
    %cst_11 = arith.constant 0.000000e+00 : f32
    %15 = vector.broadcast %cst_11 : f32 to vector<8x256xf32>
    %16 = arith.maximumf %14, %15 : vector<8x256xf32>
    %17 = arith.truncf %16 : vector<8x256xf32> to vector<8x256xbf16>
    %c0_12 = arith.constant 0 : index
    %c0_13 = arith.constant 0 : index
    %18 = vector.load %arg6[%c0_12, %c0_13] : memref<256x512xbf16, #tpu.memory_space<vmem>>, vector<256x512xbf16>
    %cst_14 = arith.constant dense<0.000000e+00> : vector<8x512xf32>
    %19 = tpu.matmul %17, %18, %cst_14 {dimension_numbers = #tpu.dot_dimension_numbers<[1], [0], [0], [1], [0, 0, 1, 1], [], []>} : vector<8x256xbf16>, vector<256x512xbf16>, vector<8x512xf32> -> vector<8x512xf32>
    %c0_15 = arith.constant 0 : index
    %c0_16 = arith.constant 0 : index
    %20 = vector.load %arg7[%c0_15, %c0_16] : memref<1x512xf32, #tpu.memory_space<vmem>>, vector<1x512xf32>
    %21 = vector.broadcast %20 : vector<1x512xf32> to vector<8x512xf32>
    %22 = arith.addf %19, %21 : vector<8x512xf32>
    %cst_17 = arith.constant 0.000000e+00 : f32
    %23 = vector.broadcast %cst_17 : f32 to vector<8x512xf32>
    %24 = arith.maximumf %22, %23 : vector<8x512xf32>
    %25 = arith.truncf %24 : vector<8x512xf32> to vector<8x512xbf16>
    %c0_18 = arith.constant 0 : index
    %c0_19 = arith.constant 0 : index
    %26 = vector.load %arg8[%c0_18, %c0_19] : memref<512x128xbf16, #tpu.memory_space<vmem>>, vector<512x128xbf16>
    %cst_20 = arith.constant dense<0.000000e+00> : vector<8x128xf32>
    %27 = tpu.matmul %25, %26, %cst_20 {dimension_numbers = #tpu.dot_dimension_numbers<[1], [0], [0], [1], [0, 0, 1, 1], [], []>} : vector<8x512xbf16>, vector<512x128xbf16>, vector<8x128xf32> -> vector<8x128xf32>
    %c0_21 = arith.constant 0 : index
    %c0_22 = arith.constant 0 : index
    %28 = vector.load %arg9[%c0_21, %c0_22] : memref<1x128xf32, #tpu.memory_space<vmem>>, vector<1x128xf32>
    %29 = vector.broadcast %28 : vector<1x128xf32> to vector<8x128xf32>
    %30 = arith.addf %27, %29 : vector<8x128xf32>
    %31 = arith.truncf %30 : vector<8x128xf32> to vector<8x128xbf16>
    %c0_23 = arith.constant 0 : index
    %c0_24 = arith.constant 0 : index
    %32 = vector.load %arg10[%c0_23, %c0_24] : memref<8x128xbf16, #tpu.memory_space<vmem>>, vector<8x128xbf16>
    tpu.vector_store %arg10[%c0_23, %c0_24], %31 {strides = array<i32>} : memref<8x128xbf16, #tpu.memory_space<vmem>>, vector<8x128xbf16>,
    return
  }
  func.func @transform_0(%arg0: i32) -> (i32, i32) {
    %c0_i32 = arith.constant 0 : i32
    %c0_i32_0 = arith.constant 0 : i32
    return %arg0, %c0_i32 : i32, i32
  }
  func.func @transform_1(%arg0: i32) -> (i32, i32) {
    %c0_i32 = arith.constant 0 : i32
    %c0_i32_0 = arith.constant 0 : i32
    %c0_i32_1 = arith.constant 0 : i32
    return %c0_i32, %c0_i32_0 : i32, i32
  }
  func.func @transform_2(%arg0: i32) -> (i32, i32) {
    %c0_i32 = arith.constant 0 : i32
    %c0_i32_0 = arith.constant 0 : i32
    %c0_i32_1 = arith.constant 0 : i32
    return %c0_i32, %c0_i32_0 : i32, i32
  }
  func.func @transform_3(%arg0: i32) -> (i32, i32) {
    %c0_i32 = arith.constant 0 : i32
    %c0_i32_0 = arith.constant 0 : i32
    %c0_i32_1 = arith.constant 0 : i32
    return %c0_i32, %c0_i32_0 : i32, i32
  }
  func.func @transform_4(%arg0: i32) -> (i32, i32) {
    %c0_i32 = arith.constant 0 : i32
    %c0_i32_0 = arith.constant 0 : i32
    %c0_i32_1 = arith.constant 0 : i32
    return %c0_i32, %c0_i32_0 : i32, i32
  }
  func.func @transform_5(%arg0: i32) -> (i32, i32) {
    %c0_i32 = arith.constant 0 : i32
    %c0_i32_0 = arith.constant 0 : i32
    %c0_i32_1 = arith.constant 0 : i32
    return %c0_i32, %c0_i32_0 : i32, i32
  }
  func.func @transform_6(%arg0: i32) -> (i32, i32) {
    %c0_i32 = arith.constant 0 : i32
    %c0_i32_0 = arith.constant 0 : i32
    %c0_i32_1 = arith.constant 0 : i32
    return %c0_i32, %c0_i32_0 : i32, i32
  }
  func.func @transform_7(%arg0: i32) -> (i32, i32) {
    %c0_i32 = arith.constant 0 : i32
    %c0_i32_0 = arith.constant 0 : i32
    %c0_i32_1 = arith.constant 0 : i32
    return %c0_i32, %c0_i32_0 : i32, i32
  }
  func.func @transform_8(%arg0: i32) -> (i32, i32) {
    %c0_i32 = arith.constant 0 : i32
    %c0_i32_0 = arith.constant 0 : i32
    %c0_i32_1 = arith.constant 0 : i32
    return %c0_i32, %c0_i32_0 : i32, i32
  }
  func.func @transform_9(%arg0: i32) -> (i32, i32) {
    %c0_i32 = arith.constant 0 : i32
    %c0_i32_0 = arith.constant 0 : i32
    return %arg0, %c0_i32 : i32, i32
  }
}

</mosaic_0001>

<llo_original>
// kernel: tpu_custom_call.1
$region0: #{tpu_custom_call.1}
  #allocation0 [shape = 'u32[]', space=smem, size = 0x4, offset = 0x4, fixed_abs, tag = 'smem constant byte address 0x4 - core index']
  #allocation1 [shape = 'u32[72,128]{1,0:T(1,128)}', space=vmem, size = 0x9000, scoped, tag = 'internal scratch']
  %s0 = inlined_call_operand.hbm [shape: f32[8,50], index: 0, kind: input, shape index: {}]
  %s1 = inlined_call_operand.hbm [shape: bf16[50,256], index: 1, kind: input, shape index: {}]
  %s2 = inlined_call_operand.hbm [shape: f32[1,256], index: 2, kind: input, shape index: {}]
  %s3 = inlined_call_operand.hbm [shape: bf16[256,256], index: 3, kind: input, shape index: {}]
  %s4 = inlined_call_operand.hbm [shape: f32[1,256], index: 4, kind: input, shape index: {}]
  %s5 = inlined_call_operand.hbm [shape: bf16[256,512], index: 5, kind: input, shape index: {}]
  %s6 = inlined_call_operand.vmem [shape: f32[1,512], index: 6, kind: input, shape index: {}]
  %s7 = inlined_call_operand.hbm [shape: bf16[512,128], index: 7, kind: input, shape index: {}]
  %s8 = inlined_call_operand.vmem [shape: f32[1,128], index: 8, kind: input, shape index: {}]
  %s9 = inlined_call_operand.hbm [shape: bf16[8,128], index: 9, kind: output, shape index: {}]
  %s10 = sld [smem:[#allocation0]]
  $region74: #{tpu_custom_call.1} parent=0
    _
  %s12 = ssub.s32 1, %s10
  %s13 = scalar_select 0, %s12, %s10
  $region1: #{tpu_custom_call.1} parent=0
    #allocation2 [shape = 'u8[4096]{0}', space=vmem, size = 0x1000, scoped, tag = 'input window, operand 0, single buffered']
    #allocation3 [shape = 's32[1]{0}', space=sflag, size = 0x4, scoped, tag = 'scoped memory for tpu_custom_call.1']
    #allocation4 [shape = 's32[1]{0}', space=sflag, size = 0x4, scoped, tag = 'scoped memory for tpu_custom_call.1']
    #allocation5 [shape = 'u8[28672]{0}', space=vmem, size = 0x7000, scoped, tag = 'input window, operand 1, single buffered']
    #allocation6 [shape = 's32[1]{0}', space=sflag, size = 0x4, scoped, tag = 'scoped memory for tpu_custom_call.1']
    #allocation7 [shape = 'u8[1024]{0}', space=vmem, size = 0x400, scoped, tag = 'input window, operand 2, single buffered']
    #allocation8 [shape = 'u8[131072]{0}', space=vmem, size = 0x20000, scoped, tag = 'input window, operand 3, single buffered']
    #allocation9 [shape = 's32[1]{0}', space=sflag, size = 0x4, scoped, tag = 'scoped memory for tpu_custom_call.1']
    #allocation10 [shape = 'u8[1024]{0}', space=vmem, size = 0x400, scoped, tag = 'input window, operand 4, single buffered']
    #allocation11 [shape = 'u8[262144]{0}', space=vmem, size = 0x40000, scoped, tag = 'input window, operand 5, single buffered']
    #allocation12 [shape = 's32[1]{0}', space=sflag, size = 0x4, scoped, tag = 'scoped memory for tpu_custom_call.1']
    #allocation13 [shape = 'u8[131072]{0}', space=vmem, size = 0x20000, scoped, tag = 'input window, operand 7, single buffered']
    #allocation14 [shape = 'u8[2048]{0}', space=vmem, size = 0x800, scoped, tag = 'output window, operand 0, single buffered']
    %14 = vsyncpa [#allocation3], 0
    %15 = vsyncpa [#allocation6], 0
    %16 = vsyncpa [#allocation9], 0
    %17 = vsyncpa [#allocation12], 0
    %18 = vsyncpa [#allocation4], 0
    // Predicated region
    $region2: #{tpu_custom_call.1} parent=1 // pred_check
      _
    $region3: #{tpu_custom_call.1} parent=1 // pred_check_branch
      %20 = sbr.rel (0) target = $region5
    $region4: #{tpu_custom_call.1} parent=1 // pred_region
      %22 = vsyncadd [#allocation3], 0
      %s24 = sshll.u32 %s0, 4
      %s25 = int_to_ptr.hbm [resolvable:$true] %s24
      %s26 = sshll.u32 [#allocation2], 4
      %s27 = int_to_ptr.vmem [resolvable:$true] %s26
      %29 = dma.hbm_to_vmem [thread:$0]  %s25, 128, %s27, [#allocation3]
    $region5: #{tpu_custom_call.1} parent=1 // pred_fallthru
      _
    // Predicated region
    $region6: #{tpu_custom_call.1} parent=1 // pred_check
      _
    $region7: #{tpu_custom_call.1} parent=1 // pred_check_branch
      %31 = sbr.rel (0) target = $region9
    $region8: #{tpu_custom_call.1} parent=1 // pred_region
      %33 = vsyncadd [#allocation6], 0
      %s34 = sshll.u32 %s1, 4
      %s35 = int_to_ptr.hbm [resolvable:$true] %s34
      %s36 = sshll.u32 [#allocation5], 4
      %s37 = int_to_ptr.vmem [resolvable:$true] %s36
      %42 = dma.hbm_to_vmem [thread:$0]  %s35, 896, %s37, [#allocation6], 128, 128, 8
    $region9: #{tpu_custom_call.1} parent=1 // pred_fallthru
      _
    // Predicated region
    $region10: #{tpu_custom_call.1} parent=1 // pred_check
      _
    $region11: #{tpu_custom_call.1} parent=1 // pred_check_branch
      %44 = sbr.rel (0) target = $region13
    $region12: #{tpu_custom_call.1} parent=1 // pred_region
      %46 = vsyncadd [#allocation6], 0
      %s48 = sshll.u32 %s2, 4
      %s49 = int_to_ptr.hbm [resolvable:$true] %s48
      %s50 = sshll.u32 [#allocation7], 4
      %s51 = int_to_ptr.vmem [resolvable:$true] %s50
      %53 = dma.hbm_to_vmem [thread:$0]  %s49, 32, %s51, [#allocation6]
    $region13: #{tpu_custom_call.1} parent=1 // pred_fallthru
      _
    // Predicated region
    $region14: #{tpu_custom_call.1} parent=1 // pred_check
      _
    $region15: #{tpu_custom_call.1} parent=1 // pred_check_branch
      %55 = sbr.rel (0) target = $region17
    $region16: #{tpu_custom_call.1} parent=1 // pred_region
      %57 = vsyncadd [#allocation9], 0
      %s58 = sshll.u32 %s3, 4
      %s59 = int_to_ptr.hbm [resolvable:$true] %s58
      %s60 = sshll.u32 [#allocation8], 4
      %s61 = int_to_ptr.vmem [resolvable:$true] %s60
      %66 = dma.hbm_to_vmem [thread:$0]  %s59, 4096, %s61, [#allocation9], 128, 128, 8
    $region17: #{tpu_custom_call.1} parent=1 // pred_fallthru
      _
    // Predicated region
    $region18: #{tpu_custom_call.1} parent=1 // pred_check
      _
    $region19: #{tpu_custom_call.1} parent=1 // pred_check_branch
      %68 = sbr.rel (0) target = $region21
    $region20: #{tpu_custom_call.1} parent=1 // pred_region
      %70 = vsyncadd [#allocation9], 0
      %s72 = sshll.u32 %s4, 4
      %s73 = int_to_ptr.hbm [resolvable:$true] %s72
      %s74 = sshll.u32 [#allocation10], 4
      %s75 = int_to_ptr.vmem [resolvable:$true] %s74
      %77 = dma.hbm_to_vmem [thread:$0]  %s73, 32, %s75, [#allocation9]
    $region21: #{tpu_custom_call.1} parent=1 // pred_fallthru
      _
    // Predicated region
    $region22: #{tpu_custom_call.1} parent=1 // pred_check
      _
    $region23: #{tpu_custom_call.1} parent=1 // pred_check_branch
      %79 = sbr.rel (0) target = $region25
    $region24: #{tpu_custom_call.1} parent=1 // pred_region
      %81 = vsyncadd [#allocation12], 0
      %s82 = sshll.u32 %s5, 4
      %s83 = int_to_ptr.hbm [resolvable:$true] %s82
      %s84 = sshll.u32 [#allocation11], 4
      %s85 = int_to_ptr.vmem [resolvable:$true] %s84
      %90 = dma.hbm_to_vmem [thread:$0]  %s83, 8192, %s85, [#allocation12], 256, 256, 16
    $region25: #{tpu_custom_call.1} parent=1 // pred_fallthru
      _
    // Predicated region
    $region26: #{tpu_custom_call.1} parent=1 // pred_check
      _
    $region27: #{tpu_custom_call.1} parent=1 // pred_check_branch
      %92 = sbr.rel (0) target = $region29
    $region28: #{tpu_custom_call.1} parent=1 // pred_region
      _
    $region29: #{tpu_custom_call.1} parent=1 // pred_fallthru
      _
    // Predicated region
    $region30: #{tpu_custom_call.1} parent=1 // pred_check
      _
    $region31: #{tpu_custom_call.1} parent=1 // pred_check_branch
      %94 = sbr.rel (0) target = $region33
    $region32: #{tpu_custom_call.1} parent=1 // pred_region
      %96 = vsyncadd [#allocation12], 0
      %s97 = sshll.u32 %s7, 4
      %s98 = int_to_ptr.hbm [resolvable:$true] %s97
      %s99 = sshll.u32 [#allocation13], 4
      %s100 = int_to_ptr.vmem [resolvable:$true] %s99
      %105 = dma.hbm_to_vmem [thread:$0]  %s98, 4096, %s100, [#allocation12], 64, 64, 4
    $region33: #{tpu_custom_call.1} parent=1 // pred_fallthru
      _
    // Predicated region
    $region34: #{tpu_custom_call.1} parent=1 // pred_check
      _
    $region35: #{tpu_custom_call.1} parent=1 // pred_check_branch
      %107 = sbr.rel (0) target = $region37
    $region36: #{tpu_custom_call.1} parent=1 // pred_region
      _
    $region37: #{tpu_custom_call.1} parent=1 // pred_fallthru
      _
    // Predicated region
    $region38: #{tpu_custom_call.1} parent=1 // pred_check
      _
    $region39: #{tpu_custom_call.1} parent=1 // pred_check_branch
      %109 = sbr.rel (0) target = $region41
    $region40: #{tpu_custom_call.1} parent=1 // pred_region
      %111 = dma.done [#allocation3], 128
    $region41: #{tpu_custom_call.1} parent=1 // pred_fallthru
      _
    // Predicated region
    $region42: #{tpu_custom_call.1} parent=1 // pred_check
      _
    $region43: #{tpu_custom_call.1} parent=1 // pred_check_branch
      %113 = sbr.rel (0) target = $region45
    $region44: #{tpu_custom_call.1} parent=1 // pred_region
      %115 = dma.done [#allocation6], 896
    $region45: #{tpu_custom_call.1} parent=1 // pred_fallthru
      _
    // Predicated region
    $region46: #{tpu_custom_call.1} parent=1 // pred_check
      _
    $region47: #{tpu_custom_call.1} parent=1 // pred_check_branch
      %117 = sbr.rel (0) target = $region49
    $region48: #{tpu_custom_call.1} parent=1 // pred_region
      %119 = dma.done [#allocation6], 32
    $region49: #{tpu_custom_call.1} parent=1 // pred_fallthru
      _
    // Predicated region
    $region50: #{tpu_custom_call.1} parent=1 // pred_check
      _
    $region51: #{tpu_custom_call.1} parent=1 // pred_check_branch
      %121 = sbr.rel (0) target = $region53
    $region52: #{tpu_custom_call.1} parent=1 // pred_region
      %123 = dma.done [#allocation9], 4096
    $region53: #{tpu_custom_call.1} parent=1 // pred_fallthru
      _
    // Predicated region
    $region54: #{tpu_custom_call.1} parent=1 // pred_check
      _
    $region55: #{tpu_custom_call.1} parent=1 // pred_check_branch
      %125 = sbr.rel (0) target = $region57
    $region56: #{tpu_custom_call.1} parent=1 // pred_region
      %127 = dma.done [#allocation9], 32
    $region57: #{tpu_custom_call.1} parent=1 // pred_fallthru
      _
    // Predicated region
    $region58: #{tpu_custom_call.1} parent=1 // pred_check
      _
    $region59: #{tpu_custom_call.1} parent=1 // pred_check_branch
      %129 = sbr.rel (0) target = $region61
    $region60: #{tpu_custom_call.1} parent=1 // pred_region
      %131 = dma.done [#allocation12], 8192
    $region61: #{tpu_custom_call.1} parent=1 // pred_fallthru
      _
    // Predicated region
    $region62: #{tpu_custom_call.1} parent=1 // pred_check
      _
    $region63: #{tpu_custom_call.1} parent=1 // pred_check_branch
      %133 = sbr.rel (0) target = $region65
    $region64: #{tpu_custom_call.1} parent=1 // pred_region
      %135 = dma.done [#allocation12], 4096
    $region65: #{tpu_custom_call.1} parent=1 // pred_fallthru
      _
    %v137 = vld [vmem:[#allocation2] sm:$0xff]
    %v138 = vpack.c.bf16 %v137, %v137
    %v139 = vld [vmem:[#allocation5] sm:$0xff]
    %v140 = vld [vmem:[#allocation5 + $0x8] sm:$0xff]
    %v141 = vld [vmem:[#allocation5 + $0x10] sm:$0xff]
    %v142 = vld [vmem:[#allocation5 + $0x18] sm:$0xff]
    %v143 = vld [vmem:[#allocation5 + $0x20] sm:$0xff]
    %v144 = vld [vmem:[#allocation5 + $0x28] sm:$0xff]
    %v145 = vld [vmem:[#allocation5 + $0x30] sm:$0x11]
    %v146 = vld [vmem:[#allocation7] sm:$0x3]
    %v148 = vperm.slane %v146, 0
    %v149 = vperm.slane %v146, 1
    %v159 = vunpack.c.l.b16 %v139
    %v160 = vunpack.c.h.b16 %v139
    %v161 = vunpack.c.l.b16 %v140
    %v162 = vunpack.c.h.b16 %v140
    %v163 = vunpack.c.l.b16 %v141
    %v164 = vunpack.c.h.b16 %v141
    %v165 = vunpack.c.l.b16 %v142
    %v166 = vunpack.c.h.b16 %v142
    %v167 = vunpack.c.l.b16 %v143
    %v168 = vunpack.c.h.b16 %v143
    %v169 = vunpack.c.l.b16 %v144
    %v170 = vunpack.c.h.b16 %v144
    %v171 = vunpack.c.l.b16 %v145
    %v172 = vunpack.c.h.b16 %v145
    %v173 = vpack.c.b16 %v161, %v159
    %v174 = vpack.c.b16 %v162, %v160
    %v175 = vpack.c.b16 %v165, %v163
    %v176 = vpack.c.b16 %v166, %v164
    %v177 = vpack.c.b16 %v169, %v167
    %v178 = vpack.c.b16 %v170, %v168
    %v179 = vpack.c.b16 %v171, %v171
    %v180 = vpack.c.b16 %v172, %v172
    %vm187 = vcmask 408576
    %v189 = vsel %vm187, %v138, 0
    %vm191 = vcmask 1040384
    %v193 = vsel %vm191, %v179, 0
    %v196 = vsel %vm191, %v180, 0
    %198 = vmatpush.bf16.msra.mxu0 0
    %199 = vmatpush.bf16.msra.mxu0 0
    %200 = vmatpush.bf16.msra.mxu0 0
    %201 = vmatpush.bf16.msra.mxu0 0
    %202 = vmatpush.bf16.msra.mxu0 %v193
    %203 = vmatpush.bf16.msra.mxu0 %v177
    %204 = vmatpush.bf16.msra.mxu0 %v175
    %205 = vmatpush.bf16.msra.mxu0 %v173
    %206 = vmatmul.bf16.gmra.mxu0 %v189
    %v207 = vpop.f32.mrf.mxu0
    %v208 = vadd.f32 %v148, %v207
    %v209 = vpop.f32.mrf.mxu0
    %210 = vdwg.mxu0
    %211 = vmatpush.bf16.msra.mxu0 0
    %212 = vmatpush.bf16.msra.mxu0 0
    %213 = vmatpush.bf16.msra.mxu0 0
    %214 = vmatpush.bf16.msra.mxu0 0
    %215 = vmatpush.bf16.msra.mxu0 %v196
    %216 = vmatpush.bf16.msra.mxu0 %v178
    %217 = vmatpush.bf16.msra.mxu0 %v176
    %218 = vmatpush.bf16.msra.mxu0 %v174
    %219 = vmatmul.bf16.gmra.mxu0 %v189
    %v220 = vpop.f32.mrf.mxu0
    %v221 = vadd.f32 %v149, %v220
    %v222 = vpop.f32.mrf.mxu0
    %223 = vdwg.mxu0
    %v224 = vmax.f32 %v208, 0.0
    %v225 = vmax.f32 %v221, 0.0
    %v226 = vpack.c.bf16 %v224, %v224
    %v227 = vpack.c.bf16 %v225, %v225
    %v228 = vld [vmem:[#allocation8] sm:$0xff]
    %v229 = vld [vmem:[#allocation8 + $0x8] sm:$0xff]
    %v230 = vld [vmem:[#allocation8 + $0x10] sm:$0xff]
    %v231 = vld [vmem:[#allocation8 + $0x18] sm:$0xff]
    %v232 = vld [vmem:[#allocation8 + $0x20] sm:$0xff]
    %v233 = vld [vmem:[#allocation8 + $0x28] sm:$0xff]
    %v234 = vld [vmem:[#allocation8 + $0x30] sm:$0xff]
    %v235 = vld [vmem:[#allocation8 + $0x38] sm:$0xff]
    %v236 = vld [vmem:[#allocation8 + $0x40] sm:$0xff]
    %v237 = vld [vmem:[#allocation8 + $0x48] sm:$0xff]
    %v238 = vld [vmem:[#allocation8 + $0x50] sm:$0xff]
    %v239 = vld [vmem:[#allocation8 + $0x58] sm:$0xff]
    %v240 = vld [vmem:[#allocation8 + $0x60] sm:$0xff]
    %v241 = vld [vmem:[#allocation8 + $0x68] sm:$0xff]
    %v242 = vld [vmem:[#allocation8 + $0x70] sm:$0xff]
    %v243 = vld [vmem:[#allocation8 + $0x78] sm:$0xff]
    %v244 = vld [vmem:[#allocation8 + $0x80] sm:$0xff]
    %v245 = vld [vmem:[#allocation8 + $0x88] sm:$0xff]
    %v246 = vld [vmem:[#allocation8 + $0x90] sm:$0xff]
    %v247 = vld [vmem:[#allocation8 + $0x98] sm:$0xff]
    %v248 = vld [vmem:[#allocation8 + $0xa0] sm:$0xff]
    %v249 = vld [vmem:[#allocation8 + $0xa8] sm:$0xff]
    %v250 = vld [vmem:[#allocation8 + $0xb0] sm:$0xff]
    %v251 = vld [vmem:[#allocation8 + $0xb8] sm:$0xff]
    %v252 = vld [vmem:[#allocation8 + $0xc0] sm:$0xff]
    %v253 = vld [vmem:[#allocation8 + $0xc8] sm:$0xff]
    %v254 = vld [vmem:[#allocation8 + $0xd0] sm:$0xff]
    %v255 = vld [vmem:[#allocation8 + $0xd8] sm:$0xff]
    %v256 = vld [vmem:[#allocation8 + $0xe0] sm:$0xff]
    %v257 = vld [vmem:[#allocation8 + $0xe8] sm:$0xff]
    %v258 = vld [vmem:[#allocation8 + $0xf0] sm:$0xff]
    %v259 = vld [vmem:[#allocation8 + $0xf8] sm:$0xff]
    %v260 = vld [vmem:[#allocation10] sm:$0x3]
    %v262 = vperm.slane %v260, 0
    %v263 = vperm.slane %v260, 1
    %v298 = vunpack.c.l.b16 %v228
    %v299 = vunpack.c.h.b16 %v228
    %v300 = vunpack.c.l.b16 %v229
    %v301 = vunpack.c.h.b16 %v229
    %v302 = vunpack.c.l.b16 %v230
    %v303 = vunpack.c.h.b16 %v230
    %v304 = vunpack.c.l.b16 %v231
    %v305 = vunpack.c.h.b16 %v231
    %v306 = vunpack.c.l.b16 %v232
    %v307 = vunpack.c.h.b16 %v232
    %v308 = vunpack.c.l.b16 %v233
    %v309 = vunpack.c.h.b16 %v233
    %v310 = vunpack.c.l.b16 %v234
    %v311 = vunpack.c.h.b16 %v234
    %v312 = vunpack.c.l.b16 %v235
    %v313 = vunpack.c.h.b16 %v235
    %v314 = vunpack.c.l.b16 %v236
    %v315 = vunpack.c.h.b16 %v236
    %v316 = vunpack.c.l.b16 %v237
    %v317 = vunpack.c.h.b16 %v237
    %v318 = vunpack.c.l.b16 %v238
    %v319 = vunpack.c.h.b16 %v238
    %v320 = vunpack.c.l.b16 %v239
    %v321 = vunpack.c.h.b16 %v239
    %v322 = vunpack.c.l.b16 %v240
    %v323 = vunpack.c.h.b16 %v240
    %v324 = vunpack.c.l.b16 %v241
    %v325 = vunpack.c.h.b16 %v241
    %v326 = vunpack.c.l.b16 %v242
    %v327 = vunpack.c.h.b16 %v242
    %v328 = vunpack.c.l.b16 %v243
    %v329 = vunpack.c.h.b16 %v243
    %v330 = vunpack.c.l.b16 %v244
    %v331 = vunpack.c.h.b16 %v244
    %v332 = vunpack.c.l.b16 %v245
    %v333 = vunpack.c.h.b16 %v245
    %v334 = vunpack.c.l.b16 %v246
    %v335 = vunpack.c.h.b16 %v246
    %v336 = vunpack.c.l.b16 %v247
    %v337 = vunpack.c.h.b16 %v247
    %v338 = vunpack.c.l.b16 %v248
    %v339 = vunpack.c.h.b16 %v248
    %v340 = vunpack.c.l.b16 %v249
    %v341 = vunpack.c.h.b16 %v249
    %v342 = vunpack.c.l.b16 %v250
    %v343 = vunpack.c.h.b16 %v250
    %v344 = vunpack.c.l.b16 %v251
    %v345 = vunpack.c.h.b16 %v251
    %v346 = vunpack.c.l.b16 %v252
    %v347 = vunpack.c.h.b16 %v252
    %v348 = vunpack.c.l.b16 %v253
    %v349 = vunpack.c.h.b16 %v253
    %v350 = vunpack.c.l.b16 %v254
    %v351 = vunpack.c.h.b16 %v254
    %v352 = vunpack.c.l.b16 %v255
    %v353 = vunpack.c.h.b16 %v255
    %v354 = vunpack.c.l.b16 %v256
    %v355 = vunpack.c.h.b16 %v256
    %v356 = vunpack.c.l.b16 %v257
    %v357 = vunpack.c.h.b16 %v257
    %v358 = vunpack.c.l.b16 %v258
    %v359 = vunpack.c.h.b16 %v258
    %v360 = vunpack.c.l.b16 %v259
    %v361 = vunpack.c.h.b16 %v259
    %v362 = vpack.c.b16 %v300, %v298
    %v363 = vpack.c.b16 %v301, %v299
    %v364 = vpack.c.b16 %v304, %v302
    %v365 = vpack.c.b16 %v305, %v303
    %v366 = vpack.c.b16 %v308, %v306
    %v367 = vpack.c.b16 %v309, %v307
    %v368 = vpack.c.b16 %v312, %v310
    %v369 = vpack.c.b16 %v313, %v311
    %v370 = vpack.c.b16 %v316, %v314
    %v371 = vpack.c.b16 %v317, %v315
    %v372 = vpack.c.b16 %v320, %v318
    %v373 = vpack.c.b16 %v321, %v319
    %v374 = vpack.c.b16 %v324, %v322
    %v375 = vpack.c.b16 %v325, %v323
    %v376 = vpack.c.b16 %v328, %v326
    %v377 = vpack.c.b16 %v329, %v327
    %v378 = vpack.c.b16 %v332, %v330
    %v379 = vpack.c.b16 %v333, %v331
    %v380 = vpack.c.b16 %v336, %v334
    %v381 = vpack.c.b16 %v337, %v335
    %v382 = vpack.c.b16 %v340, %v338
    %v383 = vpack.c.b16 %v341, %v339
    %v384 = vpack.c.b16 %v344, %v342
    %v385 = vpack.c.b16 %v345, %v343
    %v386 = vpack.c.b16 %v348, %v346
    %v387 = vpack.c.b16 %v349, %v347
    %v388 = vpack.c.b16 %v352, %v350
    %v389 = vpack.c.b16 %v353, %v351
    %v390 = vpack.c.b16 %v356, %v354
    %v391 = vpack.c.b16 %v357, %v355
    %v392 = vpack.c.b16 %v360, %v358
    %v393 = vpack.c.b16 %v361, %v359
    %426 = vmatpush.bf16.msra.mxu0 %v376
    %427 = vmatpush.bf16.msra.mxu0 %v374
    %428 = vmatpush.bf16.msra.mxu0 %v372
    %429 = vmatpush.bf16.msra.mxu0 %v370
    %430 = vmatpush.bf16.msra.mxu0 %v368
    %431 = vmatpush.bf16.msra.mxu0 %v366
    %432 = vmatpush.bf16.msra.mxu0 %v364
    %433 = vmatpush.bf16.msra.mxu0 %v362
    %434 = vmatmul.bf16.gmra.mxu0 %v226
    %v435 = vpop.f32.mrf.mxu0
    %v436 = vadd.f32 %v262, %v435
    %v437 = vpop.f32.mrf.mxu0
    %438 = vdwg.mxu0
    %439 = vmatpush.bf16.msra.mxu0 %v392
    %440 = vmatpush.bf16.msra.mxu0 %v390
    %441 = vmatpush.bf16.msra.mxu0 %v388
    %442 = vmatpush.bf16.msra.mxu0 %v386
    %443 = vmatpush.bf16.msra.mxu0 %v384
    %444 = vmatpush.bf16.msra.mxu0 %v382
    %445 = vmatpush.bf16.msra.mxu0 %v380
    %446 = vmatpush.bf16.msra.mxu0 %v378
    %447 = vmatmul.bf16.gmra.mxu0 %v227
    %v448 = vpop.f32.mrf.mxu0
    %v449 = vadd.f32 %v436, %v448
    %v450 = vpop.f32.mrf.mxu0
    %451 = vdwg.mxu0
    %452 = vmatpush.bf16.msra.mxu0 %v377
    %453 = vmatpush.bf16.msra.mxu0 %v375
    %454 = vmatpush.bf16.msra.mxu0 %v373
    %455 = vmatpush.bf16.msra.mxu0 %v371
    %456 = vmatpush.bf16.msra.mxu0 %v369
    %457 = vmatpush.bf16.msra.mxu0 %v367
    %458 = vmatpush.bf16.msra.mxu0 %v365
    %459 = vmatpush.bf16.msra.mxu0 %v363
    %460 = vmatmul.bf16.gmra.mxu0 %v226
    %v461 = vpop.f32.mrf.mxu0
    %v462 = vadd.f32 %v263, %v461
    %v463 = vpop.f32.mrf.mxu0
    %464 = vdwg.mxu0
    %465 = vmatpush.bf16.msra.mxu0 %v393
    %466 = vmatpush.bf16.msra.mxu0 %v391
    %467 = vmatpush.bf16.msra.mxu0 %v389
    %468 = vmatpush.bf16.msra.mxu0 %v387
    %469 = vmatpush.bf16.msra.mxu0 %v385
    %470 = vmatpush.bf16.msra.mxu0 %v383
    %471 = vmatpush.bf16.msra.mxu0 %v381
    %472 = vmatpush.bf16.msra.mxu0 %v379
    %473 = vmatmul.bf16.gmra.mxu0 %v227
    %v474 = vpop.f32.mrf.mxu0
    %v475 = vadd.f32 %v462, %v474
    %v476 = vpop.f32.mrf.mxu0
    %477 = vdwg.mxu0
    %v478 = vmax.f32 %v449, 0.0
    %v479 = vmax.f32 %v475, 0.0
    %v480 = vpack.c.bf16 %v478, %v478
    %v481 = vpack.c.bf16 %v479, %v479
    %v482 = vld [vmem:[#allocation11] sm:$0xff]
    %v483 = vld [vmem:[#allocation11 + $0x8] sm:$0xff]
    %v484 = vld [vmem:[#allocation11 + $0x10] sm:$0xff]
    %v485 = vld [vmem:[#allocation11 + $0x18] sm:$0xff]
    %v486 = vld [vmem:[#allocation11 + $0x20] sm:$0xff]
    %v487 = vld [vmem:[#allocation11 + $0x28] sm:$0xff]
    %v488 = vld [vmem:[#allocation11 + $0x30] sm:$0xff]
    %v489 = vld [vmem:[#allocation11 + $0x38] sm:$0xff]
    %v490 = vld [vmem:[#allocation11 + $0x40] sm:$0xff]
    %v491 = vld [vmem:[#allocation11 + $0x48] sm:$0xff]
    %v492 = vld [vmem:[#allocation11 + $0x50] sm:$0xff]
    %v493 = vld [vmem:[#allocation11 + $0x58] sm:$0xff]
    %v494 = vld [vmem:[#allocation11 + $0x60] sm:$0xff]
    %v495 = vld [vmem:[#allocation11 + $0x68] sm:$0xff]
    %v496 = vld [vmem:[#allocation11 + $0x70] sm:$0xff]
    %v497 = vld [vmem:[#allocation11 + $0x78] sm:$0xff]
    %v498 = vld [vmem:[#allocation11 + $0x80] sm:$0xff]
    %v499 = vld [vmem:[#allocation11 + $0x88] sm:$0xff]
    %v500 = vld [vmem:[#allocation11 + $0x90] sm:$0xff]
    %v501 = vld [vmem:[#allocation11 + $0x98] sm:$0xff]
    %v502 = vld [vmem:[#allocation11 + $0xa0] sm:$0xff]
    %v503 = vld [vmem:[#allocation11 + $0xa8] sm:$0xff]
    %v504 = vld [vmem:[#allocation11 + $0xb0] sm:$0xff]
    %v505 = vld [vmem:[#allocation11 + $0xb8] sm:$0xff]
    %v506 = vld [vmem:[#allocation11 + $0xc0] sm:$0xff]
    %v507 = vld [vmem:[#allocation11 + $0xc8] sm:$0xff]
    %v508 = vld [vmem:[#allocation11 + $0xd0] sm:$0xff]
    %v509 = vld [vmem:[#allocation11 + $0xd8] sm:$0xff]
    %v510 = vld [vmem:[#allocation11 + $0xe0] sm:$0xff]
    %v511 = vld [vmem:[#allocation11 + $0xe8] sm:$0xff]
    %v512 = vld [vmem:[#allocation11 + $0xf0] sm:$0xff]
    %v513 = vld [vmem:[#allocation11 + $0xf8] sm:$0xff]
    %v514 = vld [vmem:[#allocation11 + $0x100] sm:$0xff]
    %v515 = vld [vmem:[#allocation11 + $0x108] sm:$0xff]
    %v516 = vld [vmem:[#allocation11 + $0x110] sm:$0xff]
    %v517 = vld [vmem:[#allocation11 + $0x118] sm:$0xff]
    %v518 = vld [vmem:[#allocation11 + $0x120] sm:$0xff]
    %v519 = vld [vmem:[#allocation11 + $0x128] sm:$0xff]
    %v520 = vld [vmem:[#allocation11 + $0x130] sm:$0xff]
    %v521 = vld [vmem:[#allocation11 + $0x138] sm:$0xff]
    %v522 = vld [vmem:[#allocation11 + $0x140] sm:$0xff]
    %v523 = vld [vmem:[#allocation11 + $0x148] sm:$0xff]
    %v524 = vld [vmem:[#allocation11 + $0x150] sm:$0xff]
    %v525 = vld [vmem:[#allocation11 + $0x158] sm:$0xff]
    %v526 = vld [vmem:[#allocation11 + $0x160] sm:$0xff]
    %v527 = vld [vmem:[#allocation11 + $0x168] sm:$0xff]
    %v528 = vld [vmem:[#allocation11 + $0x170] sm:$0xff]
    %v529 = vld [vmem:[#allocation11 + $0x178] sm:$0xff]
    %v530 = vld [vmem:[#allocation11 + $0x180] sm:$0xff]
    %v531 = vld [vmem:[#allocation11 + $0x188] sm:$0xff]
    %v532 = vld [vmem:[#allocation11 + $0x190] sm:$0xff]
    %v533 = vld [vmem:[#allocation11 + $0x198] sm:$0xff]
    %v534 = vld [vmem:[#allocation11 + $0x1a0] sm:$0xff]
    %v535 = vld [vmem:[#allocation11 + $0x1a8] sm:$0xff]
    %v536 = vld [vmem:[#allocation11 + $0x1b0] sm:$0xff]
    %v537 = vld [vmem:[#allocation11 + $0x1b8] sm:$0xff]
    %v538 = vld [vmem:[#allocation11 + $0x1c0] sm:$0xff]
    %v539 = vld [vmem:[#allocation11 + $0x1c8] sm:$0xff]
    %v540 = vld [vmem:[#allocation11 + $0x1d0] sm:$0xff]
    %v541 = vld [vmem:[#allocation11 + $0x1d8] sm:$0xff]
    %v542 = vld [vmem:[#allocation11 + $0x1e0] sm:$0xff]
    %v543 = vld [vmem:[#allocation11 + $0x1e8] sm:$0xff]
    %v544 = vld [vmem:[#allocation11 + $0x1f0] sm:$0xff]
    %v545 = vld [vmem:[#allocation11 + $0x1f8] sm:$0xff]
    %v546 = vld [vmem:[%s6] sm:$0xf]
    %v548 = vperm.slane %v546, 0
    %v549 = vperm.slane %v546, 1
    %v550 = vperm.slane %v546, 2
    %v551 = vperm.slane %v546, 3
    %v620 = vunpack.c.l.b16 %v482
    %v621 = vunpack.c.h.b16 %v482
    %v622 = vunpack.c.l.b16 %v483
    %v623 = vunpack.c.h.b16 %v483
    %v624 = vunpack.c.l.b16 %v484
    %v625 = vunpack.c.h.b16 %v484
    %v626 = vunpack.c.l.b16 %v485
    %v627 = vunpack.c.h.b16 %v485
    %v628 = vunpack.c.l.b16 %v486
    %v629 = vunpack.c.h.b16 %v486
    %v630 = vunpack.c.l.b16 %v487
    %v631 = vunpack.c.h.b16 %v487
    %v632 = vunpack.c.l.b16 %v488
    %v633 = vunpack.c.h.b16 %v488
    %v634 = vunpack.c.l.b16 %v489
    %v635 = vunpack.c.h.b16 %v489
    %v636 = vunpack.c.l.b16 %v490
    %v637 = vunpack.c.h.b16 %v490
    %v638 = vunpack.c.l.b16 %v491
    %v639 = vunpack.c.h.b16 %v491
    %v640 = vunpack.c.l.b16 %v492
    %v641 = vunpack.c.h.b16 %v492
    %v642 = vunpack.c.l.b16 %v493
    %v643 = vunpack.c.h.b16 %v493
    %v644 = vunpack.c.l.b16 %v494
    %v645 = vunpack.c.h.b16 %v494
    %v646 = vunpack.c.l.b16 %v495
    %v647 = vunpack.c.h.b16 %v495
    %v648 = vunpack.c.l.b16 %v496
    %v649 = vunpack.c.h.b16 %v496
    %v650 = vunpack.c.l.b16 %v497
    %v651 = vunpack.c.h.b16 %v497
    %v652 = vunpack.c.l.b16 %v498
    %v653 = vunpack.c.h.b16 %v498
    %v654 = vunpack.c.l.b16 %v499
    %v655 = vunpack.c.h.b16 %v499
    %v656 = vunpack.c.l.b16 %v500
    %v657 = vunpack.c.h.b16 %v500
    %v658 = vunpack.c.l.b16 %v501
    %v659 = vunpack.c.h.b16 %v501
    %v660 = vunpack.c.l.b16 %v502
    %v661 = vunpack.c.h.b16 %v502
    %v662 = vunpack.c.l.b16 %v503
    %v663 = vunpack.c.h.b16 %v503
    %v664 = vunpack.c.l.b16 %v504
    %v665 = vunpack.c.h.b16 %v504
    %v666 = vunpack.c.l.b16 %v505
    %v667 = vunpack.c.h.b16 %v505
    %v668 = vunpack.c.l.b16 %v506
    %v669 = vunpack.c.h.b16 %v506
    %v670 = vunpack.c.l.b16 %v507
    %v671 = vunpack.c.h.b16 %v507
    %v672 = vunpack.c.l.b16 %v508
    %v673 = vunpack.c.h.b16 %v508
    %v674 = vunpack.c.l.b16 %v509
    %v675 = vunpack.c.h.b16 %v509
    %v676 = vunpack.c.l.b16 %v510
    %v677 = vunpack.c.h.b16 %v510
    %v678 = vunpack.c.l.b16 %v511
    %v679 = vunpack.c.h.b16 %v511
    %v680 = vunpack.c.l.b16 %v512
    %v681 = vunpack.c.h.b16 %v512
    %v682 = vunpack.c.l.b16 %v513
    %v683 = vunpack.c.h.b16 %v513
    %v684 = vunpack.c.l.b16 %v514
    %v685 = vunpack.c.h.b16 %v514
    %v686 = vunpack.c.l.b16 %v515
    %v687 = vunpack.c.h.b16 %v515
    %v688 = vunpack.c.l.b16 %v516
    %v689 = vunpack.c.h.b16 %v516
    %v690 = vunpack.c.l.b16 %v517
    %v691 = vunpack.c.h.b16 %v517
    %v692 = vunpack.c.l.b16 %v518
    %v693 = vunpack.c.h.b16 %v518
    %v694 = vunpack.c.l.b16 %v519
    %v695 = vunpack.c.h.b16 %v519
    %v696 = vunpack.c.l.b16 %v520
    %v697 = vunpack.c.h.b16 %v520
    %v698 = vunpack.c.l.b16 %v521
    %v699 = vunpack.c.h.b16 %v521
    %v700 = vunpack.c.l.b16 %v522
    %v701 = vunpack.c.h.b16 %v522
    %v702 = vunpack.c.l.b16 %v523
    %v703 = vunpack.c.h.b16 %v523
    %v704 = vunpack.c.l.b16 %v524
    %v705 = vunpack.c.h.b16 %v524
    %v706 = vunpack.c.l.b16 %v525
    %v707 = vunpack.c.h.b16 %v525
    %v708 = vunpack.c.l.b16 %v526
    %v709 = vunpack.c.h.b16 %v526
    %v710 = vunpack.c.l.b16 %v527
    %v711 = vunpack.c.h.b16 %v527
    %v712 = vunpack.c.l.b16 %v528
    %v713 = vunpack.c.h.b16 %v528
    %v714 = vunpack.c.l.b16 %v529
    %v715 = vunpack.c.h.b16 %v529
    %v716 = vunpack.c.l.b16 %v530
    %v717 = vunpack.c.h.b16 %v530
    %v718 = vunpack.c.l.b16 %v531
    %v719 = vunpack.c.h.b16 %v531
    %v720 = vunpack.c.l.b16 %v532
    %v721 = vunpack.c.h.b16 %v532
    %v722 = vunpack.c.l.b16 %v533
    %v723 = vunpack.c.h.b16 %v533
    %v724 = vunpack.c.l.b16 %v534
    %v725 = vunpack.c.h.b16 %v534
    %v726 = vunpack.c.l.b16 %v535
    %v727 = vunpack.c.h.b16 %v535
    %v728 = vunpack.c.l.b16 %v536
    %v729 = vunpack.c.h.b16 %v536
    %v730 = vunpack.c.l.b16 %v537
    %v731 = vunpack.c.h.b16 %v537
    %v732 = vunpack.c.l.b16 %v538
    %v733 = vunpack.c.h.b16 %v538
    %v734 = vunpack.c.l.b16 %v539
    %v735 = vunpack.c.h.b16 %v539
    %v736 = vunpack.c.l.b16 %v540
    %v737 = vunpack.c.h.b16 %v540
    %v738 = vunpack.c.l.b16 %v541
    %v739 = vunpack.c.h.b16 %v541
    %v740 = vunpack.c.l.b16 %v542
    %v741 = vunpack.c.h.b16 %v542
    %v742 = vunpack.c.l.b16 %v543
    %v743 = vunpack.c.h.b16 %v543
    %v744 = vunpack.c.l.b16 %v544
    %v745 = vunpack.c.h.b16 %v544
    %v746 = vunpack.c.l.b16 %v545
    %v747 = vunpack.c.h.b16 %v545
    %v748 = vpack.c.b16 %v624, %v620
    %v749 = vpack.c.b16 %v625, %v621
    %v750 = vpack.c.b16 %v626, %v622
    %v751 = vpack.c.b16 %v627, %v623
    %v752 = vpack.c.b16 %v632, %v628
    %v753 = vpack.c.b16 %v633, %v629
    %v754 = vpack.c.b16 %v634, %v630
    %v755 = vpack.c.b16 %v635, %v631
    %v756 = vpack.c.b16 %v640, %v636
    %v757 = vpack.c.b16 %v641, %v637
    %v758 = vpack.c.b16 %v642, %v638
    %v759 = vpack.c.b16 %v643, %v639
    %v760 = vpack.c.b16 %v648, %v644
    %v761 = vpack.c.b16 %v649, %v645
    %v762 = vpack.c.b16 %v650, %v646
    %v763 = vpack.c.b16 %v651, %v647
    %v764 = vpack.c.b16 %v656, %v652
    %v765 = vpack.c.b16 %v657, %v653
    %v766 = vpack.c.b16 %v658, %v654
    %v767 = vpack.c.b16 %v659, %v655
    %v768 = vpack.c.b16 %v664, %v660
    %v769 = vpack.c.b16 %v665, %v661
    %v770 = vpack.c.b16 %v666, %v662
    %v771 = vpack.c.b16 %v667, %v663
    %v772 = vpack.c.b16 %v672, %v668
    %v773 = vpack.c.b16 %v673, %v669
    %v774 = vpack.c.b16 %v674, %v670
    %v775 = vpack.c.b16 %v675, %v671
    %v776 = vpack.c.b16 %v680, %v676
    %v777 = vpack.c.b16 %v681, %v677
    %v778 = vpack.c.b16 %v682, %v678
    %v779 = vpack.c.b16 %v683, %v679
    %v780 = vpack.c.b16 %v688, %v684
    %v781 = vpack.c.b16 %v689, %v685
    %v782 = vpack.c.b16 %v690, %v686
    %v783 = vpack.c.b16 %v691, %v687
    %v784 = vpack.c.b16 %v696, %v692
    %v785 = vpack.c.b16 %v697, %v693
    %v786 = vpack.c.b16 %v698, %v694
    %v787 = vpack.c.b16 %v699, %v695
    %v788 = vpack.c.b16 %v704, %v700
    %v789 = vpack.c.b16 %v705, %v701
    %v790 = vpack.c.b16 %v706, %v702
    %v791 = vpack.c.b16 %v707, %v703
    %v792 = vpack.c.b16 %v712, %v708
    %v793 = vpack.c.b16 %v713, %v709
    %v794 = vpack.c.b16 %v714, %v710
    %v795 = vpack.c.b16 %v715, %v711
    %v796 = vpack.c.b16 %v720, %v716
    %v797 = vpack.c.b16 %v721, %v717
    %v798 = vpack.c.b16 %v722, %v718
    %v799 = vpack.c.b16 %v723, %v719
    %v800 = vpack.c.b16 %v728, %v724
    %v801 = vpack.c.b16 %v729, %v725
    %v802 = vpack.c.b16 %v730, %v726
    %v803 = vpack.c.b16 %v731, %v727
    %v804 = vpack.c.b16 %v736, %v732
    %v805 = vpack.c.b16 %v737, %v733
    %v806 = vpack.c.b16 %v738, %v734
    %v807 = vpack.c.b16 %v739, %v735
    %v808 = vpack.c.b16 %v744, %v740
    %v809 = vpack.c.b16 %v745, %v741
    %v810 = vpack.c.b16 %v746, %v742
    %v811 = vpack.c.b16 %v747, %v743
    %876 = vmatpush.bf16.msra.mxu0 %v776
    %877 = vmatpush.bf16.msra.mxu0 %v772
    %878 = vmatpush.bf16.msra.mxu0 %v768
    %879 = vmatpush.bf16.msra.mxu0 %v764
    %880 = vmatpush.bf16.msra.mxu0 %v760
    %881 = vmatpush.bf16.msra.mxu0 %v756
    %882 = vmatpush.bf16.msra.mxu0 %v752
    %883 = vmatpush.bf16.msra.mxu0 %v748
    %884 = vmatmul.bf16.gmra.mxu0 %v480
    %v885 = vpop.f32.mrf.mxu0
    %v886 = vadd.f32 %v548, %v885
    %v887 = vpop.f32.mrf.mxu0
    %888 = vdwg.mxu0
    %889 = vmatpush.bf16.msra.mxu0 %v808
    %890 = vmatpush.bf16.msra.mxu0 %v804
    %891 = vmatpush.bf16.msra.mxu0 %v800
    %892 = vmatpush.bf16.msra.mxu0 %v796
    %893 = vmatpush.bf16.msra.mxu0 %v792
    %894 = vmatpush.bf16.msra.mxu0 %v788
    %895 = vmatpush.bf16.msra.mxu0 %v784
    %896 = vmatpush.bf16.msra.mxu0 %v780
    %897 = vmatmul.bf16.gmra.mxu0 %v481
    %v898 = vpop.f32.mrf.mxu0
    %v899 = vadd.f32 %v886, %v898
    %v900 = vpop.f32.mrf.mxu0
    %901 = vdwg.mxu0
    %902 = vmatpush.bf16.msra.mxu0 %v777
    %903 = vmatpush.bf16.msra.mxu0 %v773
    %904 = vmatpush.bf16.msra.mxu0 %v769
    %905 = vmatpush.bf16.msra.mxu0 %v765
    %906 = vmatpush.bf16.msra.mxu0 %v761
    %907 = vmatpush.bf16.msra.mxu0 %v757
    %908 = vmatpush.bf16.msra.mxu0 %v753
    %909 = vmatpush.bf16.msra.mxu0 %v749
    %910 = vmatmul.bf16.gmra.mxu0 %v480
    %v911 = vpop.f32.mrf.mxu0
    %v912 = vadd.f32 %v549, %v911
    %v913 = vpop.f32.mrf.mxu0
    %914 = vdwg.mxu0
    %915 = vmatpush.bf16.msra.mxu0 %v809
    %916 = vmatpush.bf16.msra.mxu0 %v805
    %917 = vmatpush.bf16.msra.mxu0 %v801
    %918 = vmatpush.bf16.msra.mxu0 %v797
    %919 = vmatpush.bf16.msra.mxu0 %v793
    %920 = vmatpush.bf16.msra.mxu0 %v789
    %921 = vmatpush.bf16.msra.mxu0 %v785
    %922 = vmatpush.bf16.msra.mxu0 %v781
    %923 = vmatmul.bf16.gmra.mxu0 %v481
    %v924 = vpop.f32.mrf.mxu0
    %v925 = vadd.f32 %v912, %v924
    %v926 = vpop.f32.mrf.mxu0
    %927 = vdwg.mxu0
    %928 = vmatpush.bf16.msra.mxu0 %v778
    %929 = vmatpush.bf16.msra.mxu0 %v774
    %930 = vmatpush.bf16.msra.mxu0 %v770
    %931 = vmatpush.bf16.msra.mxu0 %v766
    %932 = vmatpush.bf16.msra.mxu0 %v762
    %933 = vmatpush.bf16.msra.mxu0 %v758
    %934 = vmatpush.bf16.msra.mxu0 %v754
    %935 = vmatpush.bf16.msra.mxu0 %v750
    %936 = vmatmul.bf16.gmra.mxu0 %v480
    %v937 = vpop.f32.mrf.mxu0
    %v938 = vadd.f32 %v550, %v937
    %v939 = vpop.f32.mrf.mxu0
    %940 = vdwg.mxu0
    %941 = vmatpush.bf16.msra.mxu0 %v810
    %942 = vmatpush.bf16.msra.mxu0 %v806
    %943 = vmatpush.bf16.msra.mxu0 %v802
    %944 = vmatpush.bf16.msra.mxu0 %v798
    %945 = vmatpush.bf16.msra.mxu0 %v794
    %946 = vmatpush.bf16.msra.mxu0 %v790
    %947 = vmatpush.bf16.msra.mxu0 %v786
    %948 = vmatpush.bf16.msra.mxu0 %v782
    %949 = vmatmul.bf16.gmra.mxu0 %v481
    %v950 = vpop.f32.mrf.mxu0
    %v951 = vadd.f32 %v938, %v950
    %v952 = vpop.f32.mrf.mxu0
    %953 = vdwg.mxu0
    %954 = vmatpush.bf16.msra.mxu0 %v779
    %955 = vmatpush.bf16.msra.mxu0 %v775
    %956 = vmatpush.bf16.msra.mxu0 %v771
    %957 = vmatpush.bf16.msra.mxu0 %v767
    %958 = vmatpush.bf16.msra.mxu0 %v763
    %959 = vmatpush.bf16.msra.mxu0 %v759
    %960 = vmatpush.bf16.msra.mxu0 %v755
    %961 = vmatpush.bf16.msra.mxu0 %v751
    %962 = vmatmul.bf16.gmra.mxu0 %v480
    %v963 = vpop.f32.mrf.mxu0
    %v964 = vadd.f32 %v551, %v963
    %v965 = vpop.f32.mrf.mxu0
    %966 = vdwg.mxu0
    %967 = vmatpush.bf16.msra.mxu0 %v811
    %968 = vmatpush.bf16.msra.mxu0 %v807
    %969 = vmatpush.bf16.msra.mxu0 %v803
    %970 = vmatpush.bf16.msra.mxu0 %v799
    %971 = vmatpush.bf16.msra.mxu0 %v795
    %972 = vmatpush.bf16.msra.mxu0 %v791
    %973 = vmatpush.bf16.msra.mxu0 %v787
    %974 = vmatpush.bf16.msra.mxu0 %v783
    %975 = vmatmul.bf16.gmra.mxu0 %v481
    %v976 = vpop.f32.mrf.mxu0
    %v977 = vadd.f32 %v964, %v976
    %v978 = vpop.f32.mrf.mxu0
    %979 = vdwg.mxu0
    %v980 = vmax.f32 %v899, 0.0
    %v981 = vmax.f32 %v925, 0.0
    %v982 = vmax.f32 %v951, 0.0
    %v983 = vmax.f32 %v977, 0.0
    %v984 = vpack.c.bf16 %v980, %v980
    %v985 = vpack.c.bf16 %v981, %v981
    %v986 = vpack.c.bf16 %v982, %v982
    %v987 = vpack.c.bf16 %v983, %v983
    %v988 = vld [vmem:[#allocation13] sm:$0xf]
    %v989 = vld [vmem:[#allocation13 + $0x4] sm:$0xf]
    %v990 = vld [vmem:[#allocation13 + $0x8] sm:$0xf]
    %v991 = vld [vmem:[#allocation13 + $0xc] sm:$0xf]
    %v992 = vld [vmem:[#allocation13 + $0x10] sm:$0xf]
    %v993 = vld [vmem:[#allocation13 + $0x14] sm:$0xf]
    %v994 = vld [vmem:[#allocation13 + $0x18] sm:$0xf]
    %v995 = vld [vmem:[#allocation13 + $0x1c] sm:$0xf]
    %v996 = vld [vmem:[#allocation13 + $0x20] sm:$0xf]
    %v997 = vld [vmem:[#allocation13 + $0x24] sm:$0xf]
    %v998 = vld [vmem:[#allocation13 + $0x28] sm:$0xf]
    %v999 = vld [vmem:[#allocation13 + $0x2c] sm:$0xf]
    %v1000 = vld [vmem:[#allocation13 + $0x30] sm:$0xf]
    %v1001 = vld [vmem:[#allocation13 + $0x34] sm:$0xf]
    %v1002 = vld [vmem:[#allocation13 + $0x38] sm:$0xf]
    %v1003 = vld [vmem:[#allocation13 + $0x3c] sm:$0xf]
    %v1004 = vld [vmem:[#allocation13 + $0x40] sm:$0xf]
    %v1005 = vld [vmem:[#allocation13 + $0x44] sm:$0xf]
    %v1006 = vld [vmem:[#allocation13 + $0x48] sm:$0xf]
    %v1007 = vld [vmem:[#allocation13 + $0x4c] sm:$0xf]
    %v1008 = vld [vmem:[#allocation13 + $0x50] sm:$0xf]
    %v1009 = vld [vmem:[#allocation13 + $0x54] sm:$0xf]
    %v1010 = vld [vmem:[#allocation13 + $0x58] sm:$0xf]
    %v1011 = vld [vmem:[#allocation13 + $0x5c] sm:$0xf]
    %v1012 = vld [vmem:[#allocation13 + $0x60] sm:$0xf]
    %v1013 = vld [vmem:[#allocation13 + $0x64] sm:$0xf]
    %v1014 = vld [vmem:[#allocation13 + $0x68] sm:$0xf]
    %v1015 = vld [vmem:[#allocation13 + $0x6c] sm:$0xf]
    %v1016 = vld [vmem:[#allocation13 + $0x70] sm:$0xf]
    %v1017 = vld [vmem:[#allocation13 + $0x74] sm:$0xf]
    %v1018 = vld [vmem:[#allocation13 + $0x78] sm:$0xf]
    %v1019 = vld [vmem:[#allocation13 + $0x7c] sm:$0xf]
    %v1020 = vld [vmem:[#allocation13 + $0x80] sm:$0xf]
    %v1021 = vld [vmem:[#allocation13 + $0x84] sm:$0xf]
    %v1022 = vld [vmem:[#allocation13 + $0x88] sm:$0xf]
    %v1023 = vld [vmem:[#allocation13 + $0x8c] sm:$0xf]
    %v1024 = vld [vmem:[#allocation13 + $0x90] sm:$0xf]
    %v1025 = vld [vmem:[#allocation13 + $0x94] sm:$0xf]
    %v1026 = vld [vmem:[#allocation13 + $0x98] sm:$0xf]
    %v1027 = vld [vmem:[#allocation13 + $0x9c] sm:$0xf]
    %v1028 = vld [vmem:[#allocation13 + $0xa0] sm:$0xf]
    %v1029 = vld [vmem:[#allocation13 + $0xa4] sm:$0xf]
    %v1030 = vld [vmem:[#allocation13 + $0xa8] sm:$0xf]
    %v1031 = vld [vmem:[#allocation13 + $0xac] sm:$0xf]
    %v1032 = vld [vmem:[#allocation13 + $0xb0] sm:$0xf]
    %v1033 = vld [vmem:[#allocation13 + $0xb4] sm:$0xf]
    %v1034 = vld [vmem:[#allocation13 + $0xb8] sm:$0xf]
    %v1035 = vld [vmem:[#allocation13 + $0xbc] sm:$0xf]
    %v1036 = vld [vmem:[#allocation13 + $0xc0] sm:$0xf]
    %v1037 = vld [vmem:[#allocation13 + $0xc4] sm:$0xf]
    %v1038 = vld [vmem:[#allocation13 + $0xc8] sm:$0xf]
    %v1039 = vld [vmem:[#allocation13 + $0xcc] sm:$0xf]
    %v1040 = vld [vmem:[#allocation13 + $0xd0] sm:$0xf]
    %v1041 = vld [vmem:[#allocation13 + $0xd4] sm:$0xf]
    %v1042 = vld [vmem:[#allocation13 + $0xd8] sm:$0xf]
    %v1043 = vld [vmem:[#allocation13 + $0xdc] sm:$0xf]
    %v1044 = vld [vmem:[#allocation13 + $0xe0] sm:$0xf]
    %v1045 = vld [vmem:[#allocation13 + $0xe4] sm:$0xf]
    %v1046 = vld [vmem:[#allocation13 + $0xe8] sm:$0xf]
    %v1047 = vld [vmem:[#allocation13 + $0xec] sm:$0xf]
    %v1048 = vld [vmem:[#allocation13 + $0xf0] sm:$0xf]
    %v1049 = vld [vmem:[#allocation13 + $0xf4] sm:$0xf]
    %v1050 = vld [vmem:[#allocation13 + $0xf8] sm:$0xf]
    %v1051 = vld [vmem:[#allocation13 + $0xfc] sm:$0xf]
    %v1052 = vld [vmem:[%s8] sm:$0x1]
    %v1054 = vperm.slane %v1052, 0
    %v1120 = vunpack.c.l.b16 %v988
    %v1121 = vunpack.c.l.b16 %v989
    %v1122 = vunpack.c.l.b16 %v990
    %v1123 = vunpack.c.l.b16 %v991
    %v1124 = vunpack.c.l.b16 %v992
    %v1125 = vunpack.c.l.b16 %v993
    %v1126 = vunpack.c.l.b16 %v994
    %v1127 = vunpack.c.l.b16 %v995
    %v1128 = vunpack.c.l.b16 %v996
    %v1129 = vunpack.c.l.b16 %v997
    %v1130 = vunpack.c.l.b16 %v998
    %v1131 = vunpack.c.l.b16 %v999
    %v1132 = vunpack.c.l.b16 %v1000
    %v1133 = vunpack.c.l.b16 %v1001
    %v1134 = vunpack.c.l.b16 %v1002
    %v1135 = vunpack.c.l.b16 %v1003
    %v1136 = vunpack.c.l.b16 %v1004
    %v1137 = vunpack.c.l.b16 %v1005
    %v1138 = vunpack.c.l.b16 %v1006
    %v1139 = vunpack.c.l.b16 %v1007
    %v1140 = vunpack.c.l.b16 %v1008
    %v1141 = vunpack.c.l.b16 %v1009
    %v1142 = vunpack.c.l.b16 %v1010
    %v1143 = vunpack.c.l.b16 %v1011
    %v1144 = vunpack.c.l.b16 %v1012
    %v1145 = vunpack.c.l.b16 %v1013
    %v1146 = vunpack.c.l.b16 %v1014
    %v1147 = vunpack.c.l.b16 %v1015
    %v1148 = vunpack.c.l.b16 %v1016
    %v1149 = vunpack.c.l.b16 %v1017
    %v1150 = vunpack.c.l.b16 %v1018
    %v1151 = vunpack.c.l.b16 %v1019
    %v1152 = vunpack.c.l.b16 %v1020
    %v1153 = vunpack.c.l.b16 %v1021
    %v1154 = vunpack.c.l.b16 %v1022
    %v1155 = vunpack.c.l.b16 %v1023
    %v1156 = vunpack.c.l.b16 %v1024
    %v1157 = vunpack.c.l.b16 %v1025
    %v1158 = vunpack.c.l.b16 %v1026
    %v1159 = vunpack.c.l.b16 %v1027
    %v1160 = vunpack.c.l.b16 %v1028
    %v1161 = vunpack.c.l.b16 %v1029
    %v1162 = vunpack.c.l.b16 %v1030
    %v1163 = vunpack.c.l.b16 %v1031
    %v1164 = vunpack.c.l.b16 %v1032
    %v1165 = vunpack.c.l.b16 %v1033
    %v1166 = vunpack.c.l.b16 %v1034
    %v1167 = vunpack.c.l.b16 %v1035
    %v1168 = vunpack.c.l.b16 %v1036
    %v1169 = vunpack.c.l.b16 %v1037
    %v1170 = vunpack.c.l.b16 %v1038
    %v1171 = vunpack.c.l.b16 %v1039
    %v1172 = vunpack.c.l.b16 %v1040
    %v1173 = vunpack.c.l.b16 %v1041
    %v1174 = vunpack.c.l.b16 %v1042
    %v1175 = vunpack.c.l.b16 %v1043
    %v1176 = vunpack.c.l.b16 %v1044
    %v1177 = vunpack.c.l.b16 %v1045
    %v1178 = vunpack.c.l.b16 %v1046
    %v1179 = vunpack.c.l.b16 %v1047
    %v1180 = vunpack.c.l.b16 %v1048
    %v1181 = vunpack.c.l.b16 %v1049
    %v1182 = vunpack.c.l.b16 %v1050
    %v1183 = vunpack.c.l.b16 %v1051
    %v1184 = vpack.c.b16 %v1121, %v1120
    %v1185 = vpack.c.b16 %v1123, %v1122
    %v1186 = vpack.c.b16 %v1125, %v1124
    %v1187 = vpack.c.b16 %v1127, %v1126
    %v1188 = vpack.c.b16 %v1129, %v1128
    %v1189 = vpack.c.b16 %v1131, %v1130
    %v1190 = vpack.c.b16 %v1133, %v1132
    %v1191 = vpack.c.b16 %v1135, %v1134
    %v1192 = vpack.c.b16 %v1137, %v1136
    %v1193 = vpack.c.b16 %v1139, %v1138
    %v1194 = vpack.c.b16 %v1141, %v1140
    %v1195 = vpack.c.b16 %v1143, %v1142
    %v1196 = vpack.c.b16 %v1145, %v1144
    %v1197 = vpack.c.b16 %v1147, %v1146
    %v1198 = vpack.c.b16 %v1149, %v1148
    %v1199 = vpack.c.b16 %v1151, %v1150
    %v1200 = vpack.c.b16 %v1153, %v1152
    %v1201 = vpack.c.b16 %v1155, %v1154
    %v1202 = vpack.c.b16 %v1157, %v1156
    %v1203 = vpack.c.b16 %v1159, %v1158
    %v1204 = vpack.c.b16 %v1161, %v1160
    %v1205 = vpack.c.b16 %v1163, %v1162
    %v1206 = vpack.c.b16 %v1165, %v1164
    %v1207 = vpack.c.b16 %v1167, %v1166
    %v1208 = vpack.c.b16 %v1169, %v1168
    %v1209 = vpack.c.b16 %v1171, %v1170
    %v1210 = vpack.c.b16 %v1173, %v1172
    %v1211 = vpack.c.b16 %v1175, %v1174
    %v1212 = vpack.c.b16 %v1177, %v1176
    %v1213 = vpack.c.b16 %v1179, %v1178
    %v1214 = vpack.c.b16 %v1181, %v1180
    %v1215 = vpack.c.b16 %v1183, %v1182
    %1248 = vmatpush.bf16.msra.mxu0 %v1191
    %1249 = vmatpush.bf16.msra.mxu0 %v1190
    %1250 = vmatpush.bf16.msra.mxu0 %v1189
    %1251 = vmatpush.bf16.msra.mxu0 %v1188
    %1252 = vmatpush.bf16.msra.mxu0 %v1187
    %1253 = vmatpush.bf16.msra.mxu0 %v1186
    %1254 = vmatpush.bf16.msra.mxu0 %v1185
    %1255 = vmatpush.bf16.msra.mxu0 %v1184
    %1256 = vmatmul.bf16.gmra.mxu0 %v984
    %v1257 = vpop.f32.mrf.mxu0
    %v1258 = vadd.f32 %v1054, %v1257
    %v1259 = vpop.f32.mrf.mxu0
    %1260 = vdwg.mxu0
    %1261 = vmatpush.bf16.msra.mxu0 %v1199
    %1262 = vmatpush.bf16.msra.mxu0 %v1198
    %1263 = vmatpush.bf16.msra.mxu0 %v1197
    %1264 = vmatpush.bf16.msra.mxu0 %v1196
    %1265 = vmatpush.bf16.msra.mxu0 %v1195
    %1266 = vmatpush.bf16.msra.mxu0 %v1194
    %1267 = vmatpush.bf16.msra.mxu0 %v1193
    %1268 = vmatpush.bf16.msra.mxu0 %v1192
    %1269 = vmatmul.bf16.gmra.mxu0 %v985
    %v1270 = vpop.f32.mrf.mxu0
    %v1271 = vadd.f32 %v1258, %v1270
    %v1272 = vpop.f32.mrf.mxu0
    %1273 = vdwg.mxu0
    %1274 = vmatpush.bf16.msra.mxu0 %v1207
    %1275 = vmatpush.bf16.msra.mxu0 %v1206
    %1276 = vmatpush.bf16.msra.mxu0 %v1205
    %1277 = vmatpush.bf16.msra.mxu0 %v1204
    %1278 = vmatpush.bf16.msra.mxu0 %v1203
    %1279 = vmatpush.bf16.msra.mxu0 %v1202
    %1280 = vmatpush.bf16.msra.mxu0 %v1201
    %1281 = vmatpush.bf16.msra.mxu0 %v1200
    %1282 = vmatmul.bf16.gmra.mxu0 %v986
    %v1283 = vpop.f32.mrf.mxu0
    %v1284 = vadd.f32 %v1271, %v1283
    %v1285 = vpop.f32.mrf.mxu0
    %1286 = vdwg.mxu0
    %1287 = vmatpush.bf16.msra.mxu0 %v1215
    %1288 = vmatpush.bf16.msra.mxu0 %v1214
    %1289 = vmatpush.bf16.msra.mxu0 %v1213
    %1290 = vmatpush.bf16.msra.mxu0 %v1212
    %1291 = vmatpush.bf16.msra.mxu0 %v1211
    %1292 = vmatpush.bf16.msra.mxu0 %v1210
    %1293 = vmatpush.bf16.msra.mxu0 %v1209
    %1294 = vmatpush.bf16.msra.mxu0 %v1208
    %1295 = vmatmul.bf16.gmra.mxu0 %v987
    %v1296 = vpop.f32.mrf.mxu0
    %v1297 = vadd.f32 %v1284, %v1296
    %v1298 = vpop.f32.mrf.mxu0
    %1299 = vdwg.mxu0
    %v1300 = vpack.c.bf16 %v1297, %v1297
    %1301 = vst [vmem:[#allocation14] sm:$0xf] %v1300
    // Predicated region
    $region66: #{tpu_custom_call.1} parent=1 // pred_check
      _
    $region67: #{tpu_custom_call.1} parent=1 // pred_check_branch
      %1303 = sbr.rel (0) target = $region69
    $region68: #{tpu_custom_call.1} parent=1 // pred_region
      %1305 = vsyncadd [#allocation4], 0
      %s1307 = sshll.u32 [#allocation14], 4
      %s1308 = int_to_ptr.vmem [resolvable:$true] %s1307
      %s1309 = sshll.u32 %s9, 4
      %s1310 = int_to_ptr.hbm [resolvable:$true] %s1309
      %1312 = dma.vmem_to_hbm [thread:$0]  %s1308, 64, %s1310, [#allocation4]
    $region69: #{tpu_custom_call.1} parent=1 // pred_fallthru
      _
    // Predicated region
    $region70: #{tpu_custom_call.1} parent=1 // pred_check
      _
    $region71: #{tpu_custom_call.1} parent=1 // pred_check_branch
      %1314 = sbr.rel (0) target = $region73
    $region72: #{tpu_custom_call.1} parent=1 // pred_region
      %1316 = dma.done [#allocation4], 64
    $region73: #{tpu_custom_call.1} parent=1 // pred_fallthru
      _
    %1317 = vsyncpa [#allocation3], 1
    %1318 = vsyncpa [#allocation6], 1
    %1319 = vsyncpa [#allocation9], 1
    %1320 = vsyncpa [#allocation12], 1
    %1321 = vsyncpa [#allocation4], 1

</llo_original>
